<compile_context>
chip_gen: v7x
topology: tpu7x:2x2x1
jax: 0.10.0
libtpu: 0.0.40
codegen_flags: <defaults>
</compile_context>

<pallas_src>
import functools

import jax
import jax.numpy as jnp
from jax.experimental import pallas as pl
from jax.experimental.pallas import tpu as pltpu


def _ngram_kernel(x_ref,    # VMEM (1, C*E) bf16   - gathered embeddings, resident
                  w1_ref,   # VMEM (C*E, H) bf16   - resident
                  b1_ref,   # VMEM (1, H) f32      - resident
                  w2_ref,   # VMEM (1, H, TV) bf16 - streamed, contiguous tile
                  b2_ref,   # VMEM (1, 1, TV) f32  - streamed
                  out_ref,  # VMEM (1, TV) f32     - this tile's logits
                  m_ref,    # VMEM (1, 1, 1) f32   - this tile's max
                  s_ref):   # VMEM (1, 1, 1) f32   - this tile's sum-exp
    # linear1 + ReLU.  Recomputed per vocab tile so the grid axis carries no
    # state ("parallel"-safe); it is tiny and fully hidden under the W2 DMA.
    h = jnp.dot(x_ref[...], w1_ref[...], preferred_element_type=jnp.float32)
    h = jnp.maximum(h + b1_ref[...], 0.0).astype(jnp.bfloat16)

    # linear2 on this vocab tile (the roofline-setting W2 stream).
    logits = jnp.dot(h, w2_ref[0], preferred_element_type=jnp.float32) + b2_ref[0]
    out_ref[...] = logits

    # Per-tile logsumexp partials; combined in the tiny wrapper epilogue.
    m = jnp.max(logits, axis=1, keepdims=True)                     # (1, 1)
    m_ref[...] = m.reshape(1, 1, 1)
    s_ref[...] = jnp.sum(jnp.exp(logits - m), axis=1, keepdims=True).reshape(1, 1, 1)


def prepare_ngram_params(emb, w1, b1, w2, b2, *, tile_v: int = 1024):
    """One-time (init) prep: bf16 cast, vocab padding, contiguous W2 pre-tiling.

    Done once at model init, not per forward, so the full-table casts/pads stay
    off the per-call HBM path.  W2 is stored as (num_tiles, H, tile_v) so every
    grid step is a single large contiguous DMA at peak HBM bandwidth.
    """
    V, E = emb.shape
    CE, H = w1.shape
    assert w2.shape == (H, V)
    assert tile_v % 128 == 0, "vocab tile must be lane-dense (multiple of 128)"

    num_tiles = pl.cdiv(V, tile_v)
    V_pad = num_tiles * tile_v

    emb_bf = emb.astype(jnp.bfloat16)
    w1_bf = w1.astype(jnp.bfloat16)
    b1_f32 = b1.astype(jnp.float32).reshape(1, H)

    # Padded W2 columns are zero; padded b2 lanes are -1e30 so those lanes never
    # win the max and their exp underflows exactly to 0.
    w2_pad = jnp.zeros((H, V_pad), jnp.bfloat16).at[:, :V].set(w2.astype(jnp.bfloat16))
    w2_tiled = jnp.transpose(w2_pad.reshape(H, num_tiles, tile_v), (1, 0, 2))

    b2_pad = jnp.full((1, V_pad), -1e30, jnp.float32).at[:, :V].set(
        b2.astype(jnp.float32).reshape(1, V))
    b2_tiled = b2_pad.reshape(num_tiles, 1, tile_v)

    return dict(emb=emb_bf, w1=w1_bf, b1=b1_f32, w2=w2_tiled, b2=b2_tiled, V=V)


@functools.partial(jax.jit, static_argnames=("V",))
def _ngram_forward_impl(indices, emb_bf, w1_bf, b1, w2_tiled, b2_tiled, *, V):
    num_tiles, H, tile_v = w2_tiled.shape
    CE = w1_bf.shape[0]
    V_pad = num_tiles * tile_v

    # Embedding gather hoisted to the wrapper: only C rows (C*E elements) move.
    x = emb_bf[indices].reshape(1, CE)

    cost = pl.CostEstimate(
        flops=2 * H * V_pad + 2 * CE * H * num_tiles,
        transcendentals=V_pad,
        bytes_accessed=(H * V_pad * 2        # W2 stream (bf16) - dominant
                        + V_pad * 4          # b2
                        + V_pad * 4          # logits written back
                        + CE * H * 2 + CE * 2 + H * 4 + num_tiles * 8),
    )

    grid_spec = pltpu.PrefetchScalarGridSpec(
        num_scalar_prefetch=0,
        grid=(num_tiles,),
        in_specs=[
            pl.BlockSpec((1, CE), lambda j: (0, 0)),             # x resident
            pl.BlockSpec((CE, H), lambda j: (0, 0)),             # W1 resident
            pl.BlockSpec((1, H), lambda j: (0, 0)),              # b1 resident
            pl.BlockSpec((1, H, tile_v), lambda j: (j, 0, 0)),   # W2 tile streamed
            pl.BlockSpec((1, 1, tile_v), lambda j: (j, 0, 0)),   # b2 tile streamed
        ],
        out_specs=[
            pl.BlockSpec((1, tile_v), lambda j: (0, j)),         # logits, lane-dense
            pl.BlockSpec((1, 1, 1), lambda j: (j, 0, 0)),        # per-tile max
            pl.BlockSpec((1, 1, 1), lambda j: (j, 0, 0)),        # per-tile sum-exp
        ],
    )

    logits, m_parts, s_parts = pl.pallas_call(
        _ngram_kernel,
        out_shape=(
            jax.ShapeDtypeStruct((1, V_pad), jnp.float32),
            jax.ShapeDtypeStruct((num_tiles, 1, 1), jnp.float32),
            jax.ShapeDtypeStruct((num_tiles, 1, 1), jnp.float32),
        ),
        grid_spec=grid_spec,
        compiler_params=pltpu.CompilerParams(
            # Vocab axis is stateless now -> parallel (megacore / both v7x TCs).
            dimension_semantics=("parallel",)),
        cost_estimate=cost,
    )(x, w1_bf, b1, w2_tiled, b2_tiled)

    # Tiny logsumexp epilogue over per-tile partials, then normalize.
    m = m_parts.reshape(num_tiles)
    s = s_parts.reshape(num_tiles)
    gm = jnp.max(m)
    lse = gm + jnp.log(jnp.sum(s * jnp.exp(m - gm)))
    return logits[:, :V] - lse


def ngram_forward(indices, params):
    """Pallas forward. indices: int32 (context,). Returns (1, vocab) f32 log-probs."""
    return _ngram_forward_impl(indices, params["emb"], params["w1"], params["b1"],
                               params["w2"], params["b2"], V=params["V"])


def ngram_forward_ref(indices, emb, w1, b1, w2, b2):
    """Pure-JAX f32 reference mirroring the PyTorch forward."""
    x = emb[indices].reshape(1, -1)
    h = jnp.maximum(x @ w1 + b1, 0.0)
    logits = h @ w2 + b2
    return jax.nn.log_softmax(logits, axis=1)


def ngram_forward_ref_bf16(indices, emb, w1, b1, w2, b2):
    """Reference mirroring the kernel's bf16 weight/activation rounding."""
    embf = emb.astype(jnp.bfloat16).astype(jnp.float32)
    w1f = w1.astype(jnp.bfloat16).astype(jnp.float32)
    w2f = w2.astype(jnp.bfloat16).astype(jnp.float32)
    x = embf[indices].reshape(1, -1)
    h = jnp.maximum(x @ w1f + b1, 0.0)
    h = h.astype(jnp.bfloat16).astype(jnp.float32)
    logits = h @ w2f + b2
    return jax.nn.log_softmax(logits, axis=1)


if __name__ == "__main__":
    # Small deterministic setup; hidden=128 is fixed by the module.
    vocab_size = 1000
    embed_size = 16
    context_size = 2
    hidden = 128

    key = jax.random.PRNGKey(0)
    k_emb, k_w1, k_b1, k_w2, k_b2, k_idx = jax.random.split(key, 6)

    emb = jax.random.normal(k_emb, (vocab_size, embed_size), jnp.float32) * 0.1
    w1 = jax.random.normal(k_w1, (context_size * embed_size, hidden), jnp.float32) * 0.1
    b1 = jax.random.normal(k_b1, (1, hidden), jnp.float32) * 0.1
    w2 = jax.random.normal(k_w2, (hidden, vocab_size), jnp.float32) * 0.1
    b2 = jax.random.normal(k_b2, (1, vocab_size), jnp.float32) * 0.1

    indices = jax.random.randint(k_idx, (context_size,), 0, vocab_size, jnp.int32)

    # One-time param prep (bf16 cast + pad + W2 pre-tiling) -- model init, not
    # per forward.  tile_v=256 at this toy vocab exercises the multi-tile
    # streaming path (V_pad=1024 -> 4 vocab tiles); use >=1024 for real vocabs.
    params = prepare_ngram_params(emb, w1, b1, w2, b2, tile_v=256)

    log_probs = ngram_forward(indices, params)
    log_probs = jax.block_until_ready(log_probs)

    ref_q = ngram_forward_ref_bf16(indices, emb, w1, b1, w2, b2)
    ref_f = ngram_forward_ref(indices, emb, w1, b1, w2, b2)

    assert log_probs.shape == (1, vocab_size)
    assert jnp.allclose(log_probs, ref_q, atol=2e-3, rtol=2e-3), \
        "mismatch vs bf16-matched reference"
    assert jnp.allclose(log_probs, ref_f, atol=3e-2, rtol=3e-2), \
        "mismatch vs f32 reference"

    print("KERNEL_OK")
</pallas_src>

<mosaic_0001>
module attributes {stable_mosaic.version = 11 : i64} {
  func.func @_ngram_kernel(%arg0: i32, %arg1: memref<1x32xbf16, #tpu.memory_space<vmem>>, %arg2: memref<32x128xbf16, #tpu.memory_space<vmem>>, %arg3: memref<1x128xf32, #tpu.memory_space<vmem>>, %arg4: memref<1x128x256xbf16, #tpu.memory_space<vmem>>, %arg5: memref<1x1x256xf32, #tpu.memory_space<vmem>>, %arg6: memref<1x256xf32, #tpu.memory_space<vmem>>, %arg7: memref<1x1x1xf32, #tpu.memory_space<vmem>>, %arg8: memref<1x1x1xf32, #tpu.memory_space<vmem>>) attributes {dimension_semantics = [#tpu.dimension_semantics<parallel>], iteration_bounds = array<i64: 4>, scalar_prefetch = 0 : i64, scratch_operands = 0 : i64, tpu.core_type = #tpu.core_type<tc>, window_params = [{pipeline_mode = #tpu.pipeline_mode<synchronous>, transform_indices = @transform_0, window_bounds = array<i64: 1, 32>}, {pipeline_mode = #tpu.pipeline_mode<synchronous>, transform_indices = @transform_1, window_bounds = array<i64: 32, 128>}, {pipeline_mode = #tpu.pipeline_mode<synchronous>, transform_indices = @transform_2, window_bounds = array<i64: 1, 128>}, {transform_indices = @transform_3, window_bounds = array<i64: 1, 128, 256>}, {transform_indices = @transform_4, window_bounds = array<i64: 1, 1, 256>}, {transform_indices = @transform_5, window_bounds = array<i64: 1, 256>}, {transform_indices = @transform_6, window_bounds = array<i64: 1, 1, 1>}, {transform_indices = @transform_7, window_bounds = array<i64: 1, 1, 1>}]} {
    %c0 = arith.constant 0 : index
    %c0_0 = arith.constant 0 : index
    %0 = vector.load %arg1[%c0, %c0_0] : memref<1x32xbf16, #tpu.memory_space<vmem>>, vector<1x32xbf16>
    %c0_1 = arith.constant 0 : index
    %c0_2 = arith.constant 0 : index
    %1 = vector.load %arg2[%c0_1, %c0_2] : memref<32x128xbf16, #tpu.memory_space<vmem>>, vector<32x128xbf16>
    %cst = arith.constant dense<0.000000e+00> : vector<1x128xf32>
    %2 = tpu.matmul %0, %1, %cst {dimension_numbers = #tpu.dot_dimension_numbers<[1], [0], [0], [1], [0, 0, 1, 1], [], []>} : vector<1x32xbf16>, vector<32x128xbf16>, vector<1x128xf32> -> vector<1x128xf32>
    %c0_3 = arith.constant 0 : index
    %c0_4 = arith.constant 0 : index
    %3 = vector.load %arg3[%c0_3, %c0_4] : memref<1x128xf32, #tpu.memory_space<vmem>>, vector<1x128xf32>
    %4 = arith.addf %2, %3 : vector<1x128xf32>
    %cst_5 = arith.constant 0.000000e+00 : f32
    %5 = vector.broadcast %cst_5 : f32 to vector<1x128xf32>
    %6 = arith.maximumf %4, %5 : vector<1x128xf32>
    %7 = arith.truncf %6 : vector<1x128xf32> to vector<1x128xbf16>
    %c0_6 = arith.constant 0 : index
    %c0_7 = arith.constant 0 : index
    %c0_8 = arith.constant 0 : index
    %8 = vector.load %arg4[%c0_6, %c0_7, %c0_8] : memref<1x128x256xbf16, #tpu.memory_space<vmem>>, vector<1x128x256xbf16>
    %9 = vector.shape_cast %8 : vector<1x128x256xbf16> to vector<128x256xbf16>
    %cst_9 = arith.constant dense<0.000000e+00> : vector<1x256xf32>
    %10 = tpu.matmul %7, %9, %cst_9 {dimension_numbers = #tpu.dot_dimension_numbers<[1], [0], [0], [1], [0, 0, 1, 1], [], []>} : vector<1x128xbf16>, vector<128x256xbf16>, vector<1x256xf32> -> vector<1x256xf32>
    %c0_10 = arith.constant 0 : index
    %c0_11 = arith.constant 0 : index
    %c0_12 = arith.constant 0 : index
    %11 = vector.load %arg5[%c0_10, %c0_11, %c0_12] : memref<1x1x256xf32, #tpu.memory_space<vmem>>, vector<1x1x256xf32>
    %12 = vector.shape_cast %11 : vector<1x1x256xf32> to vector<1x256xf32>
    %13 = arith.addf %10, %12 : vector<1x256xf32>
    %c0_13 = arith.constant 0 : index
    %c0_14 = arith.constant 0 : index
    %14 = vector.load %arg6[%c0_13, %c0_14] : memref<1x256xf32, #tpu.memory_space<vmem>>, vector<1x256xf32>
    tpu.vector_store %arg6[%c0_13, %c0_14], %13 {strides = array<i32>} : memref<1x256xf32, #tpu.memory_space<vmem>>, vector<1x256xf32>,
    %cst_15 = arith.constant dense<0xFF800000> : vector<1xf32>
    %15 = vector.multi_reduction <maximumf>, %13, %cst_15 [1] : vector<1x256xf32> to vector<1xf32>
    %16 = vector.shape_cast %15 : vector<1xf32> to vector<1x1xf32>
    %17 = vector.shape_cast %16 : vector<1x1xf32> to vector<1x1x1xf32>
    %c0_16 = arith.constant 0 : index
    %c0_17 = arith.constant 0 : index
    %c0_18 = arith.constant 0 : index
    %18 = vector.load %arg7[%c0_16, %c0_17, %c0_18] : memref<1x1x1xf32, #tpu.memory_space<vmem>>, vector<1x1x1xf32>
    tpu.vector_store %arg7[%c0_16, %c0_17, %c0_18], %17 {strides = array<i32>} : memref<1x1x1xf32, #tpu.memory_space<vmem>>, vector<1x1x1xf32>,
    %19 = vector.broadcast %16 : vector<1x1xf32> to vector<1x256xf32>
    %20 = arith.subf %13, %19 : vector<1x256xf32>
    %21 = math.exp %20 : vector<1x256xf32>
    %cst_19 = arith.constant dense<0.000000e+00> : vector<1xf32>
    %22 = vector.multi_reduction <add>, %21, %cst_19 [1] : vector<1x256xf32> to vector<1xf32>
    %23 = vector.shape_cast %22 : vector<1xf32> to vector<1x1xf32>
    %24 = vector.shape_cast %23 : vector<1x1xf32> to vector<1x1x1xf32>
    %c0_20 = arith.constant 0 : index
    %c0_21 = arith.constant 0 : index
    %c0_22 = arith.constant 0 : index
    %25 = vector.load %arg8[%c0_20, %c0_21, %c0_22] : memref<1x1x1xf32, #tpu.memory_space<vmem>>, vector<1x1x1xf32>
    tpu.vector_store %arg8[%c0_20, %c0_21, %c0_22], %24 {strides = array<i32>} : memref<1x1x1xf32, #tpu.memory_space<vmem>>, vector<1x1x1xf32>,
    return
  }
  func.func @transform_0(%arg0: i32) -> (i32, i32) {
    %c0_i32 = arith.constant 0 : i32
    %c0_i32_0 = arith.constant 0 : i32
    %c0_i32_1 = arith.constant 0 : i32
    return %c0_i32, %c0_i32_0 : i32, i32
  }
  func.func @transform_1(%arg0: i32) -> (i32, i32) {
    %c0_i32 = arith.constant 0 : i32
    %c0_i32_0 = arith.constant 0 : i32
    %c0_i32_1 = arith.constant 0 : i32
    return %c0_i32, %c0_i32_0 : i32, i32
  }
  func.func @transform_2(%arg0: i32) -> (i32, i32) {
    %c0_i32 = arith.constant 0 : i32
    %c0_i32_0 = arith.constant 0 : i32
    %c0_i32_1 = arith.constant 0 : i32
    return %c0_i32, %c0_i32_0 : i32, i32
  }
  func.func @transform_3(%arg0: i32) -> (i32, i32, i32) {
    %c0_i32 = arith.constant 0 : i32
    %c0_i32_0 = arith.constant 0 : i32
    %c0_i32_1 = arith.constant 0 : i32
    return %arg0, %c0_i32, %c0_i32_0 : i32, i32, i32
  }
  func.func @transform_4(%arg0: i32) -> (i32, i32, i32) {
    %c0_i32 = arith.constant 0 : i32
    %c0_i32_0 = arith.constant 0 : i32
    %c0_i32_1 = arith.constant 0 : i32
    return %arg0, %c0_i32, %c0_i32_0 : i32, i32, i32
  }
  func.func @transform_5(%arg0: i32) -> (i32, i32) {
    %c0_i32 = arith.constant 0 : i32
    %c0_i32_0 = arith.constant 0 : i32
    return %c0_i32, %arg0 : i32, i32
  }
  func.func @transform_6(%arg0: i32) -> (i32, i32, i32) {
    %c0_i32 = arith.constant 0 : i32
    %c0_i32_0 = arith.constant 0 : i32
    %c0_i32_1 = arith.constant 0 : i32
    return %arg0, %c0_i32, %c0_i32_0 : i32, i32, i32
  }
  func.func @transform_7(%arg0: i32) -> (i32, i32, i32) {
    %c0_i32 = arith.constant 0 : i32
    %c0_i32_0 = arith.constant 0 : i32
    %c0_i32_1 = arith.constant 0 : i32
    return %arg0, %c0_i32, %c0_i32_0 : i32, i32, i32
  }
}

</mosaic_0001>

<llo_original>
// kernel: _ngram_forward_impl.1
$region0: #{_ngram_forward_impl.1}
  #allocation0 [shape = 'u32[]', space=smem, size = 0x4, offset = 0x4, fixed_abs, tag = 'smem constant byte address 0x4 - core index']
  #allocation1 [shape = 'u32[144,128]{1,0:T(1,128)}', space=vmem, size = 0x12000, scoped, tag = 'internal scratch']
  %s0 = inlined_call_operand.vmem [shape: bf16[1,32], index: 0, kind: input, shape index: {}]
  %s1 = inlined_call_operand.vmem [shape: bf16[32,128], index: 1, kind: input, shape index: {}]
  %s2 = inlined_call_operand.vmem [shape: f32[1,128], index: 2, kind: input, shape index: {}]
  %s3 = inlined_call_operand.vmem [shape: bf16[4,128,256], index: 3, kind: input, shape index: {}]
  %s4 = inlined_call_operand.vmem [shape: f32[4,1,256], index: 4, kind: input, shape index: {}]
  %s5 = inlined_call_operand.vmem [shape: f32[1,1024], index: 5, kind: output, shape index: {0}]
  %s6 = inlined_call_operand.vmem [shape: f32[4,1,1], index: 6, kind: output, shape index: {1}]
  %s7 = inlined_call_operand.vmem [shape: f32[4,1,1], index: 7, kind: output, shape index: {2}]
  %8 = xla_tuple %s5, %s6, %s7
  %s9 = sld [smem:[#allocation0]]
  $region69: #{_ngram_forward_impl.1} parent=0
    _
  %s11 = ssub.s32 1, %s9
  %s12 = scalar_select 0, %s11, %s9
  loop: start=0, step=1, limit=6
  $region2: #{_ngram_forward_impl.1} parent=0 // loop_pre_header
    _
  $region3: #{_ngram_forward_impl.1} parent=0 // loop_header
    %s14 = sphi 0, %s18
    %p15 = scmp.ge.s32.totalorder %s14, 6
    %s22 = sphi 0, %s22
    %s24 = sphi 0, %s22
    %s25 = sphi 0, %s24
    %s39 = sphi 0, %s25
    %s43 = sphi 0, %s43
    %s45 = sphi 0, %s43
    %s46 = sphi 0, %s45
    %s60 = sphi 0, %s46
    %s64 = sphi 0, %s64
    %s66 = sphi 0, %s64
    %s67 = sphi 0, %s66
    %s81 = sphi 0, %s67
    %s87 = sphi 0, %s89
    %s90 = sphi 0, %s87
    %s91 = sphi 0, %s90
    %s107 = sphi 0, %s91
    %s113 = sphi 0, %s115
    %s116 = sphi 0, %s113
    %s117 = sphi 0, %s116
    %s133 = sphi 0, %s117
    %s139 = sphi 0, %s141
    %s142 = sphi 0, %s139
    %s143 = sphi 0, %s142
    %s159 = sphi 0, %s143
    %s165 = sphi 0, %s167
    %s168 = sphi 0, %s165
    %s169 = sphi 0, %s168
    %s185 = sphi 0, %s169
    %s191 = sphi 0, %s193
    %s194 = sphi 0, %s191
    %s195 = sphi 0, %s194
    %s211 = sphi 0, %s195
  $region4: #{_ngram_forward_impl.1} parent=0 // loop_header_branch
    %17 = sbr.rel (%p15) target = $region8
  $region5: #{_ngram_forward_impl.1} parent=0 // loop_body
    %s19 = ssub.s32 %s14, 1
    %s20 = ssub.s32 %s14, 2
    %s21 = sadd.s32 %s14, 1
    %s23 = sadd.s32 %s22, 1
    %p26 = scmp.eq.s32.totalorder %s14, 3
    %p27 = scmp.ne.s32.totalorder %s22, %s24
    %p28 = scmp.eq.s32.totalorder %s14, 0
    %p29 = por %p27, %p28
    %p30 = scmp.ne.s32.totalorder %s22, %s24
    %p31 = scmp.eq.s32.totalorder %s19, 3
    %p32 = por %p30, %p31
    %p33 = scmp.ne.s32.totalorder %s24, %s25
    %p34 = scmp.eq.s32.totalorder %s19, 0
    %p35 = por %p33, %p34
    %p36 = scmp.ne.s32.totalorder %s24, %s25
    %p37 = scmp.eq.s32.totalorder %s20, 3
    %p38 = por %p36, %p37
    %p40 = scmp.ne.s32.totalorder %s25, %s39
    %p41 = scmp.eq.s32.totalorder %s20, 0
    %p42 = por %p40, %p41
    %s44 = sadd.s32 %s43, 1
    %p47 = scmp.eq.s32.totalorder %s14, 3
    %p48 = scmp.ne.s32.totalorder %s43, %s45
    %p49 = scmp.eq.s32.totalorder %s14, 0
    %p50 = por %p48, %p49
    %p51 = scmp.ne.s32.totalorder %s43, %s45
    %p52 = scmp.eq.s32.totalorder %s19, 3
    %p53 = por %p51, %p52
    %p54 = scmp.ne.s32.totalorder %s45, %s46
    %p55 = scmp.eq.s32.totalorder %s19, 0
    %p56 = por %p54, %p55
    %p57 = scmp.ne.s32.totalorder %s45, %s46
    %p58 = scmp.eq.s32.totalorder %s20, 3
    %p59 = por %p57, %p58
    %p61 = scmp.ne.s32.totalorder %s46, %s60
    %p62 = scmp.eq.s32.totalorder %s20, 0
    %p63 = por %p61, %p62
    %s65 = sadd.s32 %s64, 1
    %p68 = scmp.eq.s32.totalorder %s14, 3
    %p69 = scmp.ne.s32.totalorder %s64, %s66
    %p70 = scmp.eq.s32.totalorder %s14, 0
    %p71 = por %p69, %p70
    %p72 = scmp.ne.s32.totalorder %s64, %s66
    %p73 = scmp.eq.s32.totalorder %s19, 3
    %p74 = por %p72, %p73
    %p75 = scmp.ne.s32.totalorder %s66, %s67
    %p76 = scmp.eq.s32.totalorder %s19, 0
    %p77 = por %p75, %p76
    %p78 = scmp.ne.s32.totalorder %s66, %s67
    %p79 = scmp.eq.s32.totalorder %s20, 3
    %p80 = por %p78, %p79
    %p82 = scmp.ne.s32.totalorder %s67, %s81
    %p83 = scmp.eq.s32.totalorder %s20, 0
    %p84 = por %p82, %p83
    %s85 = ssub.s32 %s14, %s21
    %p86 = scmp.eq.s32.totalorder %s85, 0
    %s88 = sadd.s32 %s87, 1
    %s89 = scalar_select %p86, %s87, %s88
    %p92 = pneg %p86
    %p93 = scmp.eq.s32.totalorder %s14, 3
    %p94 = por %p92, %p93
    %p95 = scmp.ne.s32.totalorder %s87, %s90
    %p96 = scmp.eq.s32.totalorder %s14, 0
    %p97 = por %p95, %p96
    %p98 = scmp.ne.s32.totalorder %s87, %s90
    %p99 = scmp.eq.s32.totalorder %s19, 3
    %p100 = por %p98, %p99
    %p101 = scmp.ne.s32.totalorder %s90, %s91
    %p102 = scmp.eq.s32.totalorder %s19, 0
    %p103 = por %p101, %p102
    %p104 = scmp.ne.s32.totalorder %s90, %s91
    %p105 = scmp.eq.s32.totalorder %s20, 3
    %p106 = por %p104, %p105
    %p108 = scmp.ne.s32.totalorder %s91, %s107
    %p109 = scmp.eq.s32.totalorder %s20, 0
    %p110 = por %p108, %p109
    %s111 = ssub.s32 %s14, %s21
    %p112 = scmp.eq.s32.totalorder %s111, 0
    %s114 = sadd.s32 %s113, 1
    %s115 = scalar_select %p112, %s113, %s114
    %p118 = pneg %p112
    %p119 = scmp.eq.s32.totalorder %s14, 3
    %p120 = por %p118, %p119
    %p121 = scmp.ne.s32.totalorder %s113, %s116
    %p122 = scmp.eq.s32.totalorder %s14, 0
    %p123 = por %p121, %p122
    %p124 = scmp.ne.s32.totalorder %s113, %s116
    %p125 = scmp.eq.s32.totalorder %s19, 3
    %p126 = por %p124, %p125
    %p127 = scmp.ne.s32.totalorder %s116, %s117
    %p128 = scmp.eq.s32.totalorder %s19, 0
    %p129 = por %p127, %p128
    %p130 = scmp.ne.s32.totalorder %s116, %s117
    %p131 = scmp.eq.s32.totalorder %s20, 3
    %p132 = por %p130, %p131
    %p134 = scmp.ne.s32.totalorder %s117, %s133
    %p135 = scmp.eq.s32.totalorder %s20, 0
    %p136 = por %p134, %p135
    %s137 = ssub.s32 %s14, %s21
    %p138 = scmp.eq.s32.totalorder %s137, 0
    %s140 = sadd.s32 %s139, 1
    %s141 = scalar_select %p138, %s139, %s140
    %p144 = pneg %p138
    %p145 = scmp.eq.s32.totalorder %s14, 3
    %p146 = por %p144, %p145
    %p147 = scmp.ne.s32.totalorder %s139, %s142
    %p148 = scmp.eq.s32.totalorder %s14, 0
    %p149 = por %p147, %p148
    %p150 = scmp.ne.s32.totalorder %s139, %s142
    %p151 = scmp.eq.s32.totalorder %s19, 3
    %p152 = por %p150, %p151
    %p153 = scmp.ne.s32.totalorder %s142, %s143
    %p154 = scmp.eq.s32.totalorder %s19, 0
    %p155 = por %p153, %p154
    %p156 = scmp.ne.s32.totalorder %s142, %s143
    %p157 = scmp.eq.s32.totalorder %s20, 3
    %p158 = por %p156, %p157
    %p160 = scmp.ne.s32.totalorder %s143, %s159
    %p161 = scmp.eq.s32.totalorder %s20, 0
    %p162 = por %p160, %p161
    %s163 = ssub.s32 %s14, %s21
    %p164 = scmp.eq.s32.totalorder %s163, 0
    %s166 = sadd.s32 %s165, 1
    %s167 = scalar_select %p164, %s165, %s166
    %p170 = pneg %p164
    %p171 = scmp.eq.s32.totalorder %s14, 3
    %p172 = por %p170, %p171
    %p173 = scmp.ne.s32.totalorder %s165, %s168
    %p174 = scmp.eq.s32.totalorder %s14, 0
    %p175 = por %p173, %p174
    %p176 = scmp.ne.s32.totalorder %s165, %s168
    %p177 = scmp.eq.s32.totalorder %s19, 3
    %p178 = por %p176, %p177
    %p179 = scmp.ne.s32.totalorder %s168, %s169
    %p180 = scmp.eq.s32.totalorder %s19, 0
    %p181 = por %p179, %p180
    %p182 = scmp.ne.s32.totalorder %s168, %s169
    %p183 = scmp.eq.s32.totalorder %s20, 3
    %p184 = por %p182, %p183
    %p186 = scmp.ne.s32.totalorder %s169, %s185
    %p187 = scmp.eq.s32.totalorder %s20, 0
    %p188 = por %p186, %p187
    %s189 = ssub.s32 %s14, %s21
    %p190 = scmp.eq.s32.totalorder %s189, 0
    %s192 = sadd.s32 %s191, 1
    %s193 = scalar_select %p190, %s191, %s192
    %p196 = pneg %p190
    %p197 = scmp.eq.s32.totalorder %s14, 3
    %p198 = por %p196, %p197
    %p199 = scmp.ne.s32.totalorder %s191, %s194
    %p200 = scmp.eq.s32.totalorder %s14, 0
    %p201 = por %p199, %p200
    %p202 = scmp.ne.s32.totalorder %s191, %s194
    %p203 = scmp.eq.s32.totalorder %s19, 3
    %p204 = por %p202, %p203
    %p205 = scmp.ne.s32.totalorder %s194, %s195
    %p206 = scmp.eq.s32.totalorder %s19, 0
    %p207 = por %p205, %p206
    %p208 = scmp.ne.s32.totalorder %s194, %s195
    %p209 = scmp.eq.s32.totalorder %s20, 3
    %p210 = por %p208, %p209
    %p212 = scmp.ne.s32.totalorder %s195, %s211
    %p213 = scmp.eq.s32.totalorder %s20, 0
    %p214 = por %p212, %p213
    %p215 = scmp.le.s32.totalorder 1, %s14
    %p216 = scmp.lt.s32.totalorder %s14, 5
    %p217 = pnand %p215, %p216
    %p218 = pneg %p217
    // Predicated region
    $region9: #{_ngram_forward_impl.1} parent=5 // pred_check
      _
    $region10: #{_ngram_forward_impl.1} parent=5 // pred_check_branch
      %220 = sbr.rel (%p217) target = $region12
    $region11: #{_ngram_forward_impl.1} parent=5 // pred_region
      %s221 = ssub.s32 %s14, 1
      // Predicated region
      $region13: #{_ngram_forward_impl.1} parent=11 // pred_check
        %p222 = pneg %p35
      $region14: #{_ngram_forward_impl.1} parent=11 // pred_check_branch
        %224 = sbr.rel (%p222) target = $region16
      $region15: #{_ngram_forward_impl.1} parent=11 // pred_region
        _
      $region16: #{_ngram_forward_impl.1} parent=11 // pred_fallthru
        _
      // Predicated region
      $region17: #{_ngram_forward_impl.1} parent=11 // pred_check
        %p225 = pneg %p56
      $region18: #{_ngram_forward_impl.1} parent=11 // pred_check_branch
        %227 = sbr.rel (%p225) target = $region20
      $region19: #{_ngram_forward_impl.1} parent=11 // pred_region
        _
      $region20: #{_ngram_forward_impl.1} parent=11 // pred_fallthru
        _
      // Predicated region
      $region21: #{_ngram_forward_impl.1} parent=11 // pred_check
        %p228 = pneg %p77
      $region22: #{_ngram_forward_impl.1} parent=11 // pred_check_branch
        %230 = sbr.rel (%p228) target = $region24
      $region23: #{_ngram_forward_impl.1} parent=11 // pred_region
        _
      $region24: #{_ngram_forward_impl.1} parent=11 // pred_fallthru
        _
    $region12: #{_ngram_forward_impl.1} parent=5 // pred_fallthru
      _
    %p231 = scmp.lt.s32.totalorder %s14, 4
    // Predicated region
    $region25: #{_ngram_forward_impl.1} parent=5 // pred_check
      %p232 = pneg %p231
    $region26: #{_ngram_forward_impl.1} parent=5 // pred_check_branch
      %234 = sbr.rel (%p232) target = $region28
    $region27: #{_ngram_forward_impl.1} parent=5 // pred_region
      // Predicated region
      $region29: #{_ngram_forward_impl.1} parent=27 // pred_check
        %p235 = pneg %p97
      $region30: #{_ngram_forward_impl.1} parent=27 // pred_check_branch
        %237 = sbr.rel (%p235) target = $region32
      $region31: #{_ngram_forward_impl.1} parent=27 // pred_region
        %p238 = scmp.lt.s32.totalorder %s14, 3
        %s239 = scalar_select %p238, %s14, 3
        %s240 = smul.addr %s239, 32
        %s241 = smul.addr %s240, 4
        %s242 = scalar_lea.vmem %s3, %s241
      $region32: #{_ngram_forward_impl.1} parent=27 // pred_fallthru
        _
      // Predicated region
      $region33: #{_ngram_forward_impl.1} parent=27 // pred_check
        %p243 = pneg %p123
      $region34: #{_ngram_forward_impl.1} parent=27 // pred_check_branch
        %245 = sbr.rel (%p243) target = $region36
      $region35: #{_ngram_forward_impl.1} parent=27 // pred_region
        %p246 = scmp.lt.s32.totalorder %s14, 3
        %s247 = scalar_select %p246, %s14, 3
        %s248 = smul.addr %s247, 2
        %s249 = scalar_lea.vmem %s4, %s248
      $region36: #{_ngram_forward_impl.1} parent=27 // pred_fallthru
        _
    $region28: #{_ngram_forward_impl.1} parent=5 // pred_fallthru
      _
    %p250 = scmp.le.s32.totalorder 1, %s14
    %p251 = scmp.lt.s32.totalorder %s14, 5
    %p252 = pnand %p250, %p251
    %p253 = pneg %p252
    // Predicated region
    $region37: #{_ngram_forward_impl.1} parent=5 // pred_check
      _
    $region38: #{_ngram_forward_impl.1} parent=5 // pred_check_branch
      %255 = sbr.rel (%p252) target = $region40
    $region39: #{_ngram_forward_impl.1} parent=5 // pred_region
      %s256 = ssub.s32 %s14, 1
      %p257 = pneg %p35
      %p258 = pneg %p32
      %p259 = pneg %p56
      %p260 = pneg %p53
      %p261 = pneg %p77
      %p262 = pneg %p74
      %p263 = scmp.lt.s32.totalorder %s19, 3
      %s264 = scalar_select %p263, %s19, 3
      %s265 = smul.addr %s264, 32
      %s266 = smul.addr %s265, 4
      %s267 = scalar_lea.vmem %s3, %s266
      %p268 = pneg %p103
      %p269 = pneg %p100
      %p270 = scmp.lt.s32.totalorder %s19, 3
      %s271 = scalar_select %p270, %s19, 3
      %s272 = smul.addr %s271, 2
      %s273 = scalar_lea.vmem %s4, %s272
      %p274 = pneg %p129
      %p275 = pneg %p126
      %p276 = pneg %p155
      %p277 = pneg %p152
      %s278 = smul.u32 2, %s19
      %p279 = scmp.lt.s32.totalorder %s278, 7
      %s280 = scalar_select %p279, %s278, 7
      %s281 = scalar_lea.vmem %s5, %s280
      %p282 = pneg %p181
      %p283 = pneg %p178
      %p284 = scmp.lt.s32.totalorder %s19, 3
      %s285 = scalar_select %p284, %s19, 3
      %s286 = scalar_lea.vmem %s6, %s285
      %p287 = pneg %p207
      %p288 = pneg %p204
      %p289 = scmp.lt.s32.totalorder %s19, 3
      %s290 = scalar_select %p289, %s19, 3
      %s291 = scalar_lea.vmem %s7, %s290
      %p292 = scmp.lt.s32.totalorder %s19, 3
      %s293 = scalar_select %p292, %s19, 3
      %s294 = smul.addr %s293, 32
      %s295 = smul.addr %s294, 4
      %s296 = scalar_lea.vmem %s3, %s295
      %p297 = scmp.lt.s32.totalorder %s19, 3
      %s298 = scalar_select %p297, %s19, 3
      %s299 = smul.addr %s298, 2
      %s300 = scalar_lea.vmem %s4, %s299
      %s301 = smul.u32 2, %s19
      %p302 = scmp.lt.s32.totalorder %s301, 7
      %s303 = scalar_select %p302, %s301, 7
      %s304 = scalar_lea.vmem %s5, %s303
      %s305 = smul.u32 2, %s19
      %p306 = scmp.lt.s32.totalorder %s19, 3
      %s307 = scalar_select %p306, %s19, 3
      %s308 = scalar_lea.vmem %s6, %s307
      %p309 = scmp.lt.s32.totalorder %s19, 3
      %s310 = scalar_select %p309, %s19, 3
      %s311 = scalar_lea.vmem %s7, %s310
      %v313 = vld [vmem:[%s0] sm:$0x1]
      %v314 = vld [vmem:[%s1] sm:$0xf]
      %v315 = vld [vmem:[%s1 + $0x4] sm:$0xf]
      %v316 = vld [vmem:[%s1 + $0x8] sm:$0xf]
      %v317 = vld [vmem:[%s1 + $0xc] sm:$0xf]
      %v318 = vld [vmem:[%s2] sm:$0x1]
      %v323 = vunpack.c.l.b16 %v314
      %v324 = vunpack.c.l.b16 %v315
      %v325 = vunpack.c.l.b16 %v316
      %v326 = vunpack.c.l.b16 %v317
      %v327 = vpack.c.b16 %v324, %v323
      %v328 = vpack.c.b16 %v326, %v325
      %vm331 = vcmask 261120
      %v333 = vsel %vm331, %v313, 0
      %335 = vmatprep.subr.bf16.mxu0 0
      %336 = vmatpush1.bf16.msra.mxu0 %v327
      %337 = vmatprep.subr.bf16.mxu0 0
      %338 = vmatpush1.bf16.msra.mxu0 %v328
      %339 = vmatprep.subr.bf16.mxu0 0
      %340 = vmatpush1.bf16.msra.mxu0 0
      %341 = vmatprep.subr.bf16.mxu0 0
      %342 = vmatpush1.bf16.msra.mxu0 0
      %343 = vmatprep.subr.bf16.mxu0 0
      %344 = vmatpush1.bf16.msra.mxu0 0
      %345 = vmatprep.subr.bf16.mxu0 0
      %346 = vmatpush1.bf16.msra.mxu0 0
      %347 = vmatprep.subr.bf16.mxu0 0
      %348 = vmatpush1.bf16.msra.mxu0 0
      %349 = vmatprep.subr.bf16.mxu0 0
      %350 = vmatpush1.bf16.msra.mxu0 0
      %351 = vmatprep.subr.bf16.mxu0 0
      %352 = vmatpush1.bf16.msra.mxu0 0
      %353 = vmatprep.subr.bf16.mxu0 0
      %354 = vmatpush1.bf16.msra.mxu0 0
      %355 = vmatprep.subr.bf16.mxu0 0
      %356 = vmatpush1.bf16.msra.mxu0 0
      %357 = vmatprep.subr.bf16.mxu0 0
      %358 = vmatpush1.bf16.msra.mxu0 0
      %359 = vmatprep.subr.bf16.mxu0 0
      %360 = vmatpush1.bf16.msra.mxu0 0
      %361 = vmatprep.subr.bf16.mxu0 0
      %362 = vmatpush1.bf16.msra.mxu0 0
      %363 = vmatprep.subr.bf16.mxu0 0
      %364 = vmatpush1.bf16.msra.mxu0 0
      %365 = vmatprep.subr.bf16.mxu0 0
      %366 = vmatpush1.bf16.msra.mxu0 0
      %367 = vmatprep.mubr.bf16.mxu0 0
      %368 = vmatmul.mubr.bf16.gmra.mrb[0].mxu0 %v333
      %v369 = vpop.f32.mrb[0].mxu0
      %v370 = vadd.f32 %v318, %v369
      %v371 = vpop.f32.mrb[0].mxu0
      %v372 = vpop.f32.mrb[0].mxu0
      %v373 = vpop.f32.mrb[0].mxu0
      %374 = vdwg.mxu0
      %v375 = vmax.f32 %v370, 0.0
      %v376 = vpack.c.bf16 %v375, %v375
      %v377 = vld [vmem:[%s296] sm:$0xff]
      %v378 = vld [vmem:[%s296 + $0x8] sm:$0xff]
      %v379 = vld [vmem:[%s296 + $0x10] sm:$0xff]
      %v380 = vld [vmem:[%s296 + $0x18] sm:$0xff]
      %v381 = vld [vmem:[%s296 + $0x20] sm:$0xff]
      %v382 = vld [vmem:[%s296 + $0x28] sm:$0xff]
      %v383 = vld [vmem:[%s296 + $0x30] sm:$0xff]
      %v384 = vld [vmem:[%s296 + $0x38] sm:$0xff]
      %v385 = vld [vmem:[%s296 + $0x40] sm:$0xff]
      %v386 = vld [vmem:[%s296 + $0x48] sm:$0xff]
      %v387 = vld [vmem:[%s296 + $0x50] sm:$0xff]
      %v388 = vld [vmem:[%s296 + $0x58] sm:$0xff]
      %v389 = vld [vmem:[%s296 + $0x60] sm:$0xff]
      %v390 = vld [vmem:[%s296 + $0x68] sm:$0xff]
      %v391 = vld [vmem:[%s296 + $0x70] sm:$0xff]
      %v392 = vld [vmem:[%s296 + $0x78] sm:$0xff]
      %v393 = vld [vmem:[%s300] sm:$0x3]
      %v410 = vunpack.c.l.b16 %v377
      %v411 = vunpack.c.h.b16 %v377
      %v412 = vunpack.c.l.b16 %v378
      %v413 = vunpack.c.h.b16 %v378
      %v414 = vunpack.c.l.b16 %v379
      %v415 = vunpack.c.h.b16 %v379
      %v416 = vunpack.c.l.b16 %v380
      %v417 = vunpack.c.h.b16 %v380
      %v418 = vunpack.c.l.b16 %v381
      %v419 = vunpack.c.h.b16 %v381
      %v420 = vunpack.c.l.b16 %v382
      %v421 = vunpack.c.h.b16 %v382
      %v422 = vunpack.c.l.b16 %v383
      %v423 = vunpack.c.h.b16 %v383
      %v424 = vunpack.c.l.b16 %v384
      %v425 = vunpack.c.h.b16 %v384
      %v426 = vunpack.c.l.b16 %v385
      %v427 = vunpack.c.h.b16 %v385
      %v428 = vunpack.c.l.b16 %v386
      %v429 = vunpack.c.h.b16 %v386
      %v430 = vunpack.c.l.b16 %v387
      %v431 = vunpack.c.h.b16 %v387
      %v432 = vunpack.c.l.b16 %v388
      %v433 = vunpack.c.h.b16 %v388
      %v434 = vunpack.c.l.b16 %v389
      %v435 = vunpack.c.h.b16 %v389
      %v436 = vunpack.c.l.b16 %v390
      %v437 = vunpack.c.h.b16 %v390
      %v438 = vunpack.c.l.b16 %v391
      %v439 = vunpack.c.h.b16 %v391
      %v440 = vunpack.c.l.b16 %v392
      %v441 = vunpack.c.h.b16 %v392
      %v442 = vpack.c.b16 %v412, %v410
      %v443 = vpack.c.b16 %v413, %v411
      %v444 = vpack.c.b16 %v416, %v414
      %v445 = vpack.c.b16 %v417, %v415
      %v446 = vpack.c.b16 %v420, %v418
      %v447 = vpack.c.b16 %v421, %v419
      %v448 = vpack.c.b16 %v424, %v422
      %v449 = vpack.c.b16 %v425, %v423
      %v450 = vpack.c.b16 %v428, %v426
      %v451 = vpack.c.b16 %v429, %v427
      %v452 = vpack.c.b16 %v432, %v430
      %v453 = vpack.c.b16 %v433, %v431
      %v454 = vpack.c.b16 %v436, %v434
      %v455 = vpack.c.b16 %v437, %v435
      %v456 = vpack.c.b16 %v440, %v438
      %v457 = vpack.c.b16 %v441, %v439
      %v475 = vlaneseq
      %v476 = vshrl.u32 %v475, 7
      %v477 = vsub.s32 0, %v476
      %v478 = vrot.slane %v393, %v477
      %v479 = vlaneseq
      %v480 = vshrl.u32 %v479, 7
      %v481 = vsub.s32 1, %v480
      %v482 = vrot.slane %v393, %v481
      %485 = vmatprep.subr.bf16.mxu0 %v443
      %486 = vmatpush1.bf16.msra.mxu0 %v442
      %487 = vmatprep.subr.bf16.mxu0 %v445
      %488 = vmatpush1.bf16.msra.mxu0 %v444
      %489 = vmatprep.subr.bf16.mxu0 %v447
      %490 = vmatpush1.bf16.msra.mxu0 %v446
      %491 = vmatprep.subr.bf16.mxu0 %v449
      %492 = vmatpush1.bf16.msra.mxu0 %v448
      %493 = vmatprep.subr.bf16.mxu0 %v451
      %494 = vmatpush1.bf16.msra.mxu0 %v450
      %495 = vmatprep.subr.bf16.mxu0 %v453
      %496 = vmatpush1.bf16.msra.mxu0 %v452
      %497 = vmatprep.subr.bf16.mxu0 %v455
      %498 = vmatpush1.bf16.msra.mxu0 %v454
      %499 = vmatprep.subr.bf16.mxu0 %v457
      %500 = vmatpush1.bf16.msra.mxu0 %v456
      %501 = vmatprep.subr.bf16.mxu0 0
      %502 = vmatpush1.bf16.msra.mxu0 0
      %503 = vmatprep.subr.bf16.mxu0 0
      %504 = vmatpush1.bf16.msra.mxu0 0
      %505 = vmatprep.subr.bf16.mxu0 0
      %506 = vmatpush1.bf16.msra.mxu0 0
      %507 = vmatprep.subr.bf16.mxu0 0
      %508 = vmatpush1.bf16.msra.mxu0 0
      %509 = vmatprep.subr.bf16.mxu0 0
      %510 = vmatpush1.bf16.msra.mxu0 0
      %511 = vmatprep.subr.bf16.mxu0 0
      %512 = vmatpush1.bf16.msra.mxu0 0
      %513 = vmatprep.subr.bf16.mxu0 0
      %514 = vmatpush1.bf16.msra.mxu0 0
      %515 = vmatprep.subr.bf16.mxu0 0
      %516 = vmatpush1.bf16.msra.mxu0 0
      %517 = vmatprep.mubr.bf16.mxu0 0
      %518 = vmatmul.mubr.bf16.gmra.mrb[0].mxu0 %v376
      %v519 = vpop.f32.mrb[0].mxu0
      %v520 = vadd.f32 %v478, %v519
      %v521 = vpop.f32.mrb[0].mxu0
      %v522 = vadd.f32 %v482, %v521
      %v523 = vpop.f32.mrb[0].mxu0
      %v524 = vpop.f32.mrb[0].mxu0
      %525 = vdwg.mxu0
      %v528 = vcombine.low %v520, %v522
      %v530 = vunpack.c.l.s4 1966171168
      %v531 = vunpack.c.0.s8 %v530
      %v532 = vlaneseq
      %v533 = vshrl.u32 %v532, 7
      %v534 = vsub.s32 %v531, %v533
      %v535 = vrot.slane %v528, %v534
      %v537 = vunpack.c.l.s4 1966171168
      %v538 = vunpack.c.0.s8 %v537
      %v539 = vlaneseq
      %v540 = vshrl.u32 %v539, 7
      %v541 = vsub.s32 %v538, %v540
      %v542 = vrot.slane %v535, %v541
      %v544 = vlaneseq
      %vm545 = vcmp.ge.s32.totalorder %v544, 0
      %vm546 = vcmp.lt.s32.totalorder %v544, 256
      %vm547 = vmand %vm545, %vm546
      %548 = vst.msk [vmem:[%s304] sm:$0x3] %vm547, %v542
      %vm549 = vcmask 1040384
      %v550 = vsel %vm549, %v520, -inf
      %v551 = vsel %vm549, %v522, -inf
      %v552 = vmax.f32 %v550, %v551
      %553 = vmax.xlane.f32.xlu0 %v552
      %v554 = vpop.xlane.xlu0 %553
      %vm555 = vcmask 0
      %556 = vst.msk [vmem:[%s308] sm:$0x1] %vm555, %v554
      %v557 = vsub.f32 %v520, %v554
      %v558 = vsub.f32 %v522, %v554
      %v559 = vmul.f32 %v557, 1.442695
      %v560 = vpow.pop %v559
      %v561 = vmul.f32 %v558, 1.442695
      %v562 = vpow.pop %v561
      %v563 = vsel %vm549, %v560, 0.0
      %v564 = vsel %vm549, %v562, 0.0
      %v565 = vadd.f32 %v563, %v564
      %566 = vadd.xlane.f32.xlu0 %v565
      %v567 = vpop.xlane.xlu0 %566
      %568 = vst.msk [vmem:[%s311] sm:$0x1] %vm555, %v567
      %s569 = smul.u32 2, %s19
      %p570 = scmp.lt.s32.totalorder %s569, 7
      %s571 = scalar_select %p570, %s569, 7
      %s572 = scalar_lea.vmem %s5, %s571
      %p573 = scmp.lt.s32.totalorder %s19, 3
      %s574 = scalar_select %p573, %s19, 3
      %s575 = scalar_lea.vmem %s6, %s574
      %p576 = scmp.lt.s32.totalorder %s19, 3
      %s577 = scalar_select %p576, %s19, 3
      %s578 = scalar_lea.vmem %s7, %s577
      // Predicated region
      $region41: #{_ngram_forward_impl.1} parent=39 // pred_check
        %p579 = pneg %p152
      $region42: #{_ngram_forward_impl.1} parent=39 // pred_check_branch
        %581 = sbr.rel (%p579) target = $region44
      $region43: #{_ngram_forward_impl.1} parent=39 // pred_region
        %s582 = smul.u32 2, %s19
      $region44: #{_ngram_forward_impl.1} parent=39 // pred_fallthru
        _
      // Predicated region
      $region45: #{_ngram_forward_impl.1} parent=39 // pred_check
        %p583 = pneg %p178
      $region46: #{_ngram_forward_impl.1} parent=39 // pred_check_branch
        %585 = sbr.rel (%p583) target = $region48
      $region47: #{_ngram_forward_impl.1} parent=39 // pred_region
        _
      $region48: #{_ngram_forward_impl.1} parent=39 // pred_fallthru
        _
      // Predicated region
      $region49: #{_ngram_forward_impl.1} parent=39 // pred_check
        %p586 = pneg %p204
      $region50: #{_ngram_forward_impl.1} parent=39 // pred_check_branch
        %588 = sbr.rel (%p586) target = $region52
      $region51: #{_ngram_forward_impl.1} parent=39 // pred_region
        _
      $region52: #{_ngram_forward_impl.1} parent=39 // pred_fallthru
        _
    $region40: #{_ngram_forward_impl.1} parent=5 // pred_fallthru
      _
    %p589 = scmp.le.s32.totalorder 2, %s14
    // Predicated region
    $region53: #{_ngram_forward_impl.1} parent=5 // pred_check
      %p590 = pneg %p589
    $region54: #{_ngram_forward_impl.1} parent=5 // pred_check_branch
      %592 = sbr.rel (%p590) target = $region56
    $region55: #{_ngram_forward_impl.1} parent=5 // pred_region
      %s593 = ssub.s32 %s14, 2
      // Predicated region
      $region57: #{_ngram_forward_impl.1} parent=55 // pred_check
        %p594 = pneg %p158
      $region58: #{_ngram_forward_impl.1} parent=55 // pred_check_branch
        %596 = sbr.rel (%p594) target = $region60
      $region59: #{_ngram_forward_impl.1} parent=55 // pred_region
        %s597 = smul.u32 2, %s20
        %p598 = scmp.lt.s32.totalorder %s597, 7
        %s599 = scalar_select %p598, %s597, 7
        %s600 = scalar_lea.vmem %s5, %s599
      $region60: #{_ngram_forward_impl.1} parent=55 // pred_fallthru
        _
      // Predicated region
      $region61: #{_ngram_forward_impl.1} parent=55 // pred_check
        %p601 = pneg %p184
      $region62: #{_ngram_forward_impl.1} parent=55 // pred_check_branch
        %603 = sbr.rel (%p601) target = $region64
      $region63: #{_ngram_forward_impl.1} parent=55 // pred_region
        %p604 = scmp.lt.s32.totalorder %s20, 3
        %s605 = scalar_select %p604, %s20, 3
        %s606 = scalar_lea.vmem %s6, %s605
      $region64: #{_ngram_forward_impl.1} parent=55 // pred_fallthru
        _
      // Predicated region
      $region65: #{_ngram_forward_impl.1} parent=55 // pred_check
        %p607 = pneg %p210
      $region66: #{_ngram_forward_impl.1} parent=55 // pred_check_branch
        %609 = sbr.rel (%p607) target = $region68
      $region67: #{_ngram_forward_impl.1} parent=55 // pred_region
        %p610 = scmp.lt.s32.totalorder %s20, 3
        %s611 = scalar_select %p610, %s20, 3
        %s612 = scalar_lea.vmem %s7, %s611
      $region68: #{_ngram_forward_impl.1} parent=55 // pred_fallthru
        _
    $region56: #{_ngram_forward_impl.1} parent=5 // pred_fallthru
      _
  $region6: #{_ngram_forward_impl.1} parent=0 // loop_footer
    %s18 = sadd.s32 1, %s14
  $region7: #{_ngram_forward_impl.1} parent=0 // loop_footer_branch
    %13 = sbr.rel target = $region3
  $region8: #{_ngram_forward_impl.1} parent=0 // loop_exit
    _

</llo_original>
